<compile_context>
chip_gen: v6e
topology: v6e:2x2x1
jax: 0.10.0
libtpu: 0.0.40
codegen_flags: <defaults>
</compile_context>

<pallas_src>
import math
from functools import partial

import jax
import jax.numpy as jnp
from jax.experimental import pallas as pl
from jax.experimental.pallas import tpu as pltpu


# -----------------------------------------------------------------------------
# Default path: out = pcd / scaling_factor   (perturb_pcd_scale == 0)
# -----------------------------------------------------------------------------
def _scale_kernel(x_ref, o_ref, *, inv_scale):
    # Pure register compute; lane-dense (tr, LANE) tile, unmasked stores.
    o_ref[...] = (x_ref[...] * inv_scale).astype(o_ref.dtype)


def _pcd_scale(pcd, scaling_factor):
    orig_shape = pcd.shape
    total = math.prod(orig_shape)
    flat = pcd.reshape(-1)  # free reshape, no transpose

    # Pick the widest lane dim (multiple of 128) that tiles the tensor exactly.
    lane = None
    for c in (4096, 2048, 1024, 512, 256, 128):
        if total % (8 * c) == 0:
            lane = c
            break
    if lane is None:
        lane = 128
        pad = (-total) % (8 * lane)
        flat = jnp.pad(flat, (0, pad))
    rows = flat.shape[0] // lane
    x2d = flat.reshape(rows, lane)

    # ~1 MiB f32 per block per buffer; keep the row tile a multiple of 8.
    tr = max(8, min(rows, ((1 << 20) // (lane * 4)) // 8 * 8))
    grid = (pl.cdiv(rows, tr),)

    out2d = pl.pallas_call(
        partial(_scale_kernel, inv_scale=float(1.0 / scaling_factor)),
        out_shape=jax.ShapeDtypeStruct((rows, lane), pcd.dtype),
        grid_spec=pltpu.PrefetchScalarGridSpec(
            num_scalar_prefetch=0,
            grid=grid,
            in_specs=[pl.BlockSpec((tr, lane), lambda i: (i, 0))],
            out_specs=pl.BlockSpec((tr, lane), lambda i: (i, 0)),
        ),
        compiler_params=pltpu.CompilerParams(
            dimension_semantics=("parallel",),
        ),
    )(x2d)

    return out2d.reshape(-1)[:total].reshape(orig_shape)


# -----------------------------------------------------------------------------
# Perturbation path: out = clip(pcd + t * noise, -0.45, 0.45) / scaling_factor
# (t and noise are passed in; fused into one elementwise Pallas pass)
# -----------------------------------------------------------------------------
def _perturb_clip_scale_kernel(x_ref, t_ref, n_ref, o_ref, *, clip_lo, clip_hi,
                               inv_scale):
    x = x_ref[...] + t_ref[...] * n_ref[...]      # (B,1) broadcasts over lanes
    x = jnp.clip(x, clip_lo, clip_hi)
    o_ref[...] = (x * inv_scale).astype(o_ref.dtype)


def _pcd_perturb_clip_scale(pcd, t, noise, scaling_factor):
    B = pcd.shape[0]
    D = math.prod(pcd.shape[1:])                  # points*3 on the lane axis
    out2d = pl.pallas_call(
        partial(
            _perturb_clip_scale_kernel,
            clip_lo=-0.45, clip_hi=0.45,
            inv_scale=float(1.0 / scaling_factor),
        ),
        out_shape=jax.ShapeDtypeStruct((B, D), pcd.dtype),
    )(pcd.reshape(B, D), t.reshape(B, 1), noise.reshape(B, D))
    return out2d.reshape(pcd.shape)


# -----------------------------------------------------------------------------
# Module forward
# -----------------------------------------------------------------------------
def pcd_scaler_forward(pcd, *, scaling_factor=0.45, perturb_pcd_scale=0.0,
                       rng_key=None, t=None, noise=None):
    # TODO(synk): torch @autocast decorator (dtype-casting wrapper) not modeled;
    # computation is kept in the input dtype (f32 here).
    if perturb_pcd_scale > 0:
        if t is None or noise is None:
            assert rng_key is not None, "rng_key required when perturbing"
            k1, k2 = jax.random.split(rng_key)
            # t / noise generated with jax.random in the wrapper (instead of
            # in-kernel pltpu PRNG) so the Pallas result is bit-checkable
            # against a host reference using identical randoms.
            t = jax.random.uniform(k1, (pcd.shape[0], 1, 1),
                                   dtype=pcd.dtype) * perturb_pcd_scale
            noise = jax.random.normal(k2, pcd.shape, dtype=pcd.dtype)
        return _pcd_perturb_clip_scale(pcd, t, noise, scaling_factor)
    return _pcd_scale(pcd, scaling_factor)


# -----------------------------------------------------------------------------
# Pure-JAX reference (mirrors the PyTorch forward)
# -----------------------------------------------------------------------------
def _reference_forward(pcd, *, scaling_factor, perturb_pcd_scale,
                       t=None, noise=None):
    if perturb_pcd_scale > 0:
        pcd = pcd + t * noise
        pcd = jnp.clip(pcd, -0.45, 0.45)
    return pcd / scaling_factor


if __name__ == "__main__":
    scaling_factor = 0.45
    B, N, C = 2, 2048, 3                              # pcd: (batch, n_points, 3)

    key = jax.random.PRNGKey(0)
    k_pcd, k_t, k_n = jax.random.split(key, 3)
    pcd = 0.45 * jax.random.uniform(k_pcd, (B, N, C), dtype=jnp.float32,
                                    minval=-1.0, maxval=1.0)

    # ---- default configuration: perturb_pcd_scale = 0.0 (pure scaling) ----
    out = pcd_scaler_forward(pcd, scaling_factor=scaling_factor,
                             perturb_pcd_scale=0.0)
    out = jax.block_until_ready(out)
    ref = _reference_forward(pcd, scaling_factor=scaling_factor,
                             perturb_pcd_scale=0.0)
    assert out.shape == pcd.shape, out.shape
    assert float(jnp.max(jnp.abs(out - ref))) < 1e-5

    # ---- perturbation branch, checked with identical randoms ----
    perturb = 0.1
    t = jax.random.uniform(k_t, (B, 1, 1), dtype=jnp.float32) * perturb
    noise = jax.random.normal(k_n, (B, N, C), dtype=jnp.float32)
    out_p = pcd_scaler_forward(pcd, scaling_factor=scaling_factor,
                               perturb_pcd_scale=perturb, t=t, noise=noise)
    out_p = jax.block_until_ready(out_p)
    ref_p = _reference_forward(pcd, scaling_factor=scaling_factor,
                               perturb_pcd_scale=perturb, t=t, noise=noise)
    assert out_p.shape == pcd.shape, out_p.shape
    assert float(jnp.max(jnp.abs(out_p - ref_p))) < 1e-5
    # clip(-0.45,0.45)/0.45 bound
    assert float(jnp.max(jnp.abs(out_p))) <= 1.0 + 1e-5

    print("KERNEL_OK")
</pallas_src>

<mosaic_0001>
module attributes {stable_mosaic.version = 11 : i64} {
  func.func @_scale_kernel(%arg0: i32, %arg1: memref<24x512xf32, #tpu.memory_space<vmem>>, %arg2: memref<24x512xf32, #tpu.memory_space<vmem>>) attributes {dimension_semantics = [#tpu.dimension_semantics<parallel>], iteration_bounds = array<i64: 1>, scalar_prefetch = 0 : i64, scratch_operands = 0 : i64, tpu.core_type = #tpu.core_type<tc>, window_params = [{transform_indices = @transform_0, window_bounds = array<i64: 24, 512>}, {transform_indices = @transform_1, window_bounds = array<i64: 24, 512>}]} {
    %c0 = arith.constant 0 : index
    %c0_0 = arith.constant 0 : index
    %0 = vector.load %arg1[%c0, %c0_0] : memref<24x512xf32, #tpu.memory_space<vmem>>, vector<24x512xf32>
    %cst = arith.constant 2.22222233 : f32
    %1 = vector.broadcast %cst : f32 to vector<24x512xf32>
    %2 = arith.mulf %0, %1 : vector<24x512xf32>
    %c0_1 = arith.constant 0 : index
    %c0_2 = arith.constant 0 : index
    %3 = vector.load %arg2[%c0_1, %c0_2] : memref<24x512xf32, #tpu.memory_space<vmem>>, vector<24x512xf32>
    tpu.vector_store %arg2[%c0_1, %c0_2], %2 {strides = array<i32>} : memref<24x512xf32, #tpu.memory_space<vmem>>, vector<24x512xf32>,
    return
  }
  func.func @transform_0(%arg0: i32) -> (i32, i32) {
    %c0_i32 = arith.constant 0 : i32
    %c0_i32_0 = arith.constant 0 : i32
    return %arg0, %c0_i32 : i32, i32
  }
  func.func @transform_1(%arg0: i32) -> (i32, i32) {
    %c0_i32 = arith.constant 0 : i32
    %c0_i32_0 = arith.constant 0 : i32
    return %arg0, %c0_i32 : i32, i32
  }
}

</mosaic_0001>

<llo_original>
// kernel: tpu_custom_call.1
$region0: #{tpu_custom_call.1}
  #allocation0 [shape = 'u32[]', space=smem, size = 0x4, offset = 0x4, fixed_abs, tag = 'smem constant byte address 0x4 - core index']
  #allocation1 [shape = 'u32[144,128]{1,0:T(1,128)}', space=vmem, size = 0x12000, scoped, tag = 'internal scratch']
  %s0 = inlined_call_operand.hbm [shape: f32[24,512], index: 0, kind: input, shape index: {}]
  %s1 = inlined_call_operand.hbm [shape: f32[24,512], index: 1, kind: output, shape index: {}]
  %s2 = sld [smem:[#allocation0]]
  $region18: #{tpu_custom_call.1} parent=0
    _
  %s4 = ssub.s32 1, %s2
  %s5 = scalar_select 0, %s4, %s2
  $region1: #{tpu_custom_call.1} parent=0
    #allocation2 [shape = 'u8[49152]{0}', space=vmem, size = 0xc000, scoped, tag = 'input window, operand 0, single buffered']
    #allocation3 [shape = 's32[1]{0}', space=sflag, size = 0x4, scoped, tag = 'scoped memory for tpu_custom_call.1']
    #allocation4 [shape = 's32[1]{0}', space=sflag, size = 0x4, scoped, tag = 'scoped memory for tpu_custom_call.1']
    #allocation5 [shape = 'u8[49152]{0}', space=vmem, size = 0xc000, scoped, tag = 'output window, operand 0, single buffered']
    %6 = vsyncpa [#allocation3], 0
    %7 = vsyncpa [#allocation4], 0
    // Predicated region
    $region2: #{tpu_custom_call.1} parent=1 // pred_check
      _
    $region3: #{tpu_custom_call.1} parent=1 // pred_check_branch
      %9 = sbr.rel (0) target = $region5
    $region4: #{tpu_custom_call.1} parent=1 // pred_region
      %s11 = ssub.s32 1536, 1536
      %12 = vsyncadd [#allocation3], %s11
      %s13 = sshll.u32 [#allocation2], 4
      %s14 = int_to_ptr.vmem [resolvable:$true] %s13
      %19 = dma.hbm_to_vmem [thread:$0]  %s0, 1536, %s14, [#allocation3], 512, 512, 32
    $region5: #{tpu_custom_call.1} parent=1 // pred_fallthru
      _
    // Predicated region
    $region6: #{tpu_custom_call.1} parent=1 // pred_check
      _
    $region7: #{tpu_custom_call.1} parent=1 // pred_check_branch
      %21 = sbr.rel (0) target = $region9
    $region8: #{tpu_custom_call.1} parent=1 // pred_region
      %22 = dma.done [#allocation3], 1536
    $region9: #{tpu_custom_call.1} parent=1 // pred_fallthru
      _
    %v23 = vld [vmem:[#allocation2] sm:$0xff]
    %v24 = vld [vmem:[#allocation2 + $0x8] sm:$0xff]
    %v25 = vld [vmem:[#allocation2 + $0x10] sm:$0xff]
    %v26 = vld [vmem:[#allocation2 + $0x18] sm:$0xff]
    %v27 = vld [vmem:[#allocation2 + $0x20] sm:$0xff]
    %v28 = vld [vmem:[#allocation2 + $0x28] sm:$0xff]
    %v29 = vld [vmem:[#allocation2 + $0x30] sm:$0xff]
    %v30 = vld [vmem:[#allocation2 + $0x38] sm:$0xff]
    %v31 = vld [vmem:[#allocation2 + $0x40] sm:$0xff]
    %v32 = vld [vmem:[#allocation2 + $0x48] sm:$0xff]
    %v33 = vld [vmem:[#allocation2 + $0x50] sm:$0xff]
    %v34 = vld [vmem:[#allocation2 + $0x58] sm:$0xff]
    %v35 = vmul.f32 %v23, 2.2222223
    %v36 = vmul.f32 %v24, 2.2222223
    %v37 = vmul.f32 %v25, 2.2222223
    %v38 = vmul.f32 %v26, 2.2222223
    %v39 = vmul.f32 %v27, 2.2222223
    %v40 = vmul.f32 %v28, 2.2222223
    %v41 = vmul.f32 %v29, 2.2222223
    %v42 = vmul.f32 %v30, 2.2222223
    %v43 = vmul.f32 %v31, 2.2222223
    %v44 = vmul.f32 %v32, 2.2222223
    %v45 = vmul.f32 %v33, 2.2222223
    %v46 = vmul.f32 %v34, 2.2222223
    %47 = vst [vmem:[#allocation5] sm:$0xff] %v35
    %48 = vst [vmem:[#allocation5 + $0x8] sm:$0xff] %v36
    %49 = vst [vmem:[#allocation5 + $0x10] sm:$0xff] %v37
    %50 = vst [vmem:[#allocation5 + $0x18] sm:$0xff] %v38
    %51 = vst [vmem:[#allocation5 + $0x20] sm:$0xff] %v39
    %52 = vst [vmem:[#allocation5 + $0x28] sm:$0xff] %v40
    %53 = vst [vmem:[#allocation5 + $0x30] sm:$0xff] %v41
    %54 = vst [vmem:[#allocation5 + $0x38] sm:$0xff] %v42
    %55 = vst [vmem:[#allocation5 + $0x40] sm:$0xff] %v43
    %56 = vst [vmem:[#allocation5 + $0x48] sm:$0xff] %v44
    %57 = vst [vmem:[#allocation5 + $0x50] sm:$0xff] %v45
    %58 = vst [vmem:[#allocation5 + $0x58] sm:$0xff] %v46
    // Predicated region
    $region10: #{tpu_custom_call.1} parent=1 // pred_check
      _
    $region11: #{tpu_custom_call.1} parent=1 // pred_check_branch
      %60 = sbr.rel (0) target = $region13
    $region12: #{tpu_custom_call.1} parent=1 // pred_region
      %s62 = ssub.s32 1536, 1536
      %63 = vsyncadd [#allocation4], %s62
      %s64 = sshll.u32 [#allocation5], 4
      %s65 = int_to_ptr.vmem [resolvable:$true] %s64
      %70 = dma.vmem_to_hbm [thread:$0]  %s65, 1536, %s1, [#allocation4], 512, 512, 32
    $region13: #{tpu_custom_call.1} parent=1 // pred_fallthru
      _
    // Predicated region
    $region14: #{tpu_custom_call.1} parent=1 // pred_check
      _
    $region15: #{tpu_custom_call.1} parent=1 // pred_check_branch
      %72 = sbr.rel (0) target = $region17
    $region16: #{tpu_custom_call.1} parent=1 // pred_region
      %73 = dma.done [#allocation4], 1536
    $region17: #{tpu_custom_call.1} parent=1 // pred_fallthru
      _
    %74 = vsyncpa [#allocation3], 1
    %75 = vsyncpa [#allocation4], 1

</llo_original>
